<compile_context>
chip_gen: v6e
topology: v6e:2x2x1
jax: 0.10.0
libtpu: 0.0.40
codegen_flags: <defaults>
</compile_context>

<pallas_src>
import jax
import jax.numpy as jnp
from jax import lax
from jax.experimental import pallas as pl
from jax.experimental.pallas import tpu as pltpu

C = 1.0  # curvature (fixed, train_c=False)


def _make_kernel(n_rows, block_rows):
    """Builds the kernel closure (n_rows / block_rows are static Python ints)."""

    def kernel(x_ref, o_ref, num_acc, den_acc):
        pid = pl.program_id(0)

        @pl.when(pid == 0)
        def _init():
            num_acc[...] = jnp.zeros_like(num_acc)
            den_acc[...] = jnp.zeros_like(den_acc)

        # ---- load + mask padded rows of the (possibly ragged) final block ---
        # Zeroing x here keeps every downstream op finite, so no second
        # full-tile select is needed on `num` later.
        row = pid * block_rows + lax.broadcasted_iota(
            jnp.int32, (block_rows, 1), 0)
        valid = row < n_rows                                 # (TN, 1)
        x = jnp.where(valid, x_ref[...].astype(jnp.float32), 0.0)   # (TN, D)

        sqrt_c = jnp.float32(C) ** 0.5
        maxnorm = (1.0 - 1e-3) / sqrt_c

        # ---- expmap0 + project, algebraically collapsed ----------------------
        # Only cross-lane reduction per row: ||x||^2.
        #   ||gamma|| = tanh(sqrt_c*||x||)/sqrt_c   (exact, no 2nd norm reduce)
        #   x_h       = x * p_norm / u_norm,  p_norm = min(||gamma||, maxnorm)
        sq = jnp.sum(x * x, axis=-1, keepdims=True)          # (TN, 1)
        u_norm = jnp.maximum(jnp.sqrt(sq), 1e-5)
        th = jnp.tanh(jnp.clip(sqrt_c * u_norm, -15.0, 15.0))
        p_norm = jnp.minimum(th / sqrt_c, maxnorm)           # = ||x_h||
        sq_p = p_norm * p_norm                               # (TN, 1)

        # ---- Klein model, collapsed ------------------------------------------
        #   lamb       = (1 + c*sq_p) / (1 - c*sq_p)
        #   lamb * x_k = 2 * x_h / (1 - c*sq_p)      (x_k never materializes)
        inv_1m = 1.0 / (1.0 - C * sq_p)                      # (TN, 1)
        lamb = jnp.where(valid, (1.0 + C * sq_p) * inv_1m, 0.0)
        num = x * (2.0 * (p_norm / u_norm) * inv_1m)         # (TN, D), rows padded->0

        # ---- accumulate over samples (dim 0): plain vreg adds into residents --
        num_acc[...] += jnp.sum(num, axis=0, keepdims=True)  # (1, D)
        den_acc[...] += jnp.sum(lamb, axis=0, keepdims=True) # (1, 1)

        @pl.when(pid == pl.num_programs(0) - 1)
        def _finalize():
            mean_k = num_acc[...] / den_acc[...]             # Einstein midpoint
            sq_m = jnp.sum(mean_k * mean_k, axis=-1, keepdims=True)
            center = mean_k / (1.0 + jnp.sqrt(1.0 - C * sq_m))   # k2p
            o_ref[...] = center.astype(o_ref.dtype)

    return kernel


def hyperbolic_forward(x, *, block_rows=None, vmem_budget_bytes=8 * 1024 * 1024):
    """x: (N, D) float array -> (1, D) Poincare-ball mean (c = 1)."""
    n, d = x.shape
    itemsize = jnp.dtype(x.dtype).itemsize

    # ---- rows per block: multiple of 8, biggest that fits the VMEM budget ----
    if block_rows is None:
        block_rows = vmem_budget_bytes // (2 * d * itemsize)   # 2x = double buffer
        block_rows = min(block_rows, 1024)                     # diminishing returns
    block_rows = max(8, (block_rows // 8) * 8)
    block_rows = min(block_rows, max(8, ((n + 7) // 8) * 8))

    grid = (pl.cdiv(n, block_rows),)    # ragged final block handled in-kernel

    kernel = _make_kernel(n, block_rows)
    cost = pl.CostEstimate(
        flops=12 * n * d,
        transcendentals=3 * n,
        bytes_accessed=n * d * itemsize + d * itemsize,
    )

    return pl.pallas_call(
        kernel,
        out_shape=jax.ShapeDtypeStruct((1, d), x.dtype),
        grid_spec=pltpu.PrefetchScalarGridSpec(
            num_scalar_prefetch=0,
            grid=grid,
            in_specs=[pl.BlockSpec((block_rows, d), lambda i: (i, 0))],
            out_specs=pl.BlockSpec((1, d), lambda i: (0, 0)),
            scratch_shapes=[
                pltpu.VMEM((1, d), jnp.float32),   # sum(lamb * x_k)
                pltpu.VMEM((1, 1), jnp.float32),   # sum(lamb)
            ],
        ),
        compiler_params=pltpu.CompilerParams(
            dimension_semantics=("arbitrary",),    # sample axis is a reduction
            vmem_limit_bytes=32 * 1024 * 1024,
        ),
        cost_estimate=cost,
    )(x)


def _reference(x):
    """Pure-JAX reference mirroring the PyTorch hyptorch code path."""
    x = x.astype(jnp.float32)
    sqrt_c = jnp.float32(C) ** 0.5
    u_norm = jnp.maximum(jnp.linalg.norm(x, axis=-1, keepdims=True), 1e-5)
    gamma = jnp.tanh(jnp.clip(sqrt_c * u_norm, -15, 15)) * x / (sqrt_c * u_norm)
    g_norm = jnp.maximum(jnp.linalg.norm(gamma, axis=-1, keepdims=True), 1e-5)
    maxnorm = (1 - 1e-3) / sqrt_c
    x_h = jnp.where(g_norm > maxnorm, gamma / g_norm * maxnorm, gamma)
    x_h = x_h[:, None, :]                                            # unsqueeze(1)
    x_k = 2 * x_h / (1 + C * jnp.sum(x_h ** 2, -1, keepdims=True))
    lamb = 1.0 / jnp.sqrt(1 - C * jnp.sum(x_k ** 2, -1, keepdims=True))
    mean_k = jnp.sum(lamb * x_k, 0, keepdims=True) / jnp.sum(lamb, 0, keepdims=True)
    center = mean_k / (1 + jnp.sqrt(1 - C * jnp.sum(mean_k ** 2, -1, keepdims=True)))
    return jnp.squeeze(center, 0)                                    # (1, D)


if __name__ == "__main__":
    key = jax.random.PRNGKey(0)

    # Case 1: N not a multiple of the block -> exercises the ragged final block
    # (no host padding; in-kernel masking only).
    N, D = 60, 128
    x = jax.random.normal(key, (N, D), dtype=jnp.float32) * 0.1
    out = jax.block_until_ready(hyperbolic_forward(x, block_rows=16))  # 4 blocks
    ref = _reference(x)
    assert out.shape == (1, D), out.shape
    assert jnp.allclose(out, ref, atol=1e-3, rtol=1e-3), (
        float(jnp.max(jnp.abs(out - ref))), out, ref)

    # Case 2: default block sizing (single block, whole array resident).
    N2 = 256
    x2 = jax.random.normal(jax.random.PRNGKey(1), (N2, D), dtype=jnp.float32) * 0.2
    out2 = jax.block_until_ready(hyperbolic_forward(x2))
    ref2 = _reference(x2)
    assert out2.shape == (1, D), out2.shape
    assert jnp.allclose(out2, ref2, atol=1e-3, rtol=1e-3), (
        float(jnp.max(jnp.abs(out2 - ref2))), out2, ref2)

    print("KERNEL_OK")
</pallas_src>

<mosaic_0001>
module attributes {stable_mosaic.version = 11 : i64} {
  func.func @kernel(%arg0: i32, %arg1: memref<16x128xf32, #tpu.memory_space<vmem>>, %arg2: memref<1x128xf32, #tpu.memory_space<vmem>>, %arg3: memref<1x128xf32, #tpu.memory_space<vmem>>, %arg4: memref<1x1xf32, #tpu.memory_space<vmem>>) attributes {dimension_semantics = [#tpu.dimension_semantics<arbitrary>], iteration_bounds = array<i64: 4>, scalar_prefetch = 0 : i64, scratch_operands = 2 : i64, tpu.core_type = #tpu.core_type<tc>, window_params = [{transform_indices = @transform_0, window_bounds = array<i64: 16, 128>}, {pipeline_mode = #tpu.pipeline_mode<synchronous>, transform_indices = @transform_1, window_bounds = array<i64: 1, 128>}]} {
    %c0_i32 = arith.constant 0 : i32
    %0 = arith.cmpi eq, %arg0, %c0_i32 : i32
    %1 = arith.extui %0 : i1 to i32
    %c0_i32_0 = arith.constant 0 : i32
    %2 = arith.cmpi ne, %1, %c0_i32_0 : i32
    scf.if %2 {
      %cst_27 = arith.constant 0.000000e+00 : f32
      %66 = vector.broadcast %cst_27 : f32 to vector<1x128xf32>
      %c0_28 = arith.constant 0 : index
      %c0_29 = arith.constant 0 : index
      %67 = vector.load %arg3[%c0_28, %c0_29] : memref<1x128xf32, #tpu.memory_space<vmem>>, vector<1x128xf32>
      tpu.vector_store %arg3[%c0_28, %c0_29], %66 {strides = array<i32>} : memref<1x128xf32, #tpu.memory_space<vmem>>, vector<1x128xf32>,
      %cst_30 = arith.constant 0.000000e+00 : f32
      %68 = vector.broadcast %cst_30 : f32 to vector<1x1xf32>
      %c0_31 = arith.constant 0 : index
      %c0_32 = arith.constant 0 : index
      %69 = vector.load %arg4[%c0_31, %c0_32] : memref<1x1xf32, #tpu.memory_space<vmem>>, vector<1x1xf32>
      tpu.vector_store %arg4[%c0_31, %c0_32], %68 {strides = array<i32>} : memref<1x1xf32, #tpu.memory_space<vmem>>, vector<1x1xf32>,
    } else {
    }
    %c16_i32 = arith.constant 16 : i32
    %3 = arith.muli %arg0, %c16_i32 : i32
    %4 = tpu.iota {dimensions = array<i32: 0>} : vector<16x1xi32>
    %5 = vector.broadcast %3 : i32 to vector<16x1xi32>
    %6 = arith.addi %5, %4 : vector<16x1xi32>
    %c60_i32 = arith.constant 60 : i32
    %7 = vector.broadcast %c60_i32 : i32 to vector<16x1xi32>
    %8 = arith.cmpi slt, %6, %7 : vector<16x1xi32>
    %c0 = arith.constant 0 : index
    %c0_1 = arith.constant 0 : index
    %9 = vector.load %arg1[%c0, %c0_1] : memref<16x128xf32, #tpu.memory_space<vmem>>, vector<16x128xf32>
    %cst = arith.constant 0.000000e+00 : f32
    %10 = vector.shape_cast %8 : vector<16x1xi1> to vector<16x1xi1>
    %11 = vector.broadcast %10 : vector<16x1xi1> to vector<16x128xi1>
    %12 = vector.broadcast %cst : f32 to vector<16x128xf32>
    %13 = arith.select %11, %9, %12 : vector<16x128xi1>, vector<16x128xf32>
    %cst_2 = arith.constant 1.000000e+00 : f32
    %cst_3 = arith.constant 5.000000e-01 : f32
    %14 = math.powf %cst_2, %cst_3 : f32
    %cst_4 = arith.constant 9.990000e-01 : f32
    %15 = arith.divf %cst_4, %14 : f32
    %16 = arith.mulf %13, %13 : vector<16x128xf32>
    %cst_5 = arith.constant dense<0.000000e+00> : vector<16xf32>
    %17 = vector.multi_reduction <add>, %16, %cst_5 [1] : vector<16x128xf32> to vector<16xf32>
    %18 = vector.shape_cast %17 : vector<16xf32> to vector<16x1xf32>
    %19 = math.sqrt %18 : vector<16x1xf32>
    %cst_6 = arith.constant 9.99999974E-6 : f32
    %20 = vector.broadcast %cst_6 : f32 to vector<16x1xf32>
    %21 = arith.maximumf %19, %20 : vector<16x1xf32>
    %22 = vector.broadcast %14 : f32 to vector<16x1xf32>
    %23 = arith.mulf %22, %21 : vector<16x1xf32>
    %cst_7 = arith.constant -1.500000e+01 : f32
    %cst_8 = arith.constant 1.500000e+01 : f32
    %24 = vector.broadcast %cst_7 : f32 to vector<16x1xf32>
    %25 = arith.maximumf %24, %23 : vector<16x1xf32>
    %26 = vector.broadcast %cst_8 : f32 to vector<16x1xf32>
    %27 = arith.minimumf %26, %25 : vector<16x1xf32>
    %28 = math.tanh %27 : vector<16x1xf32>
    %29 = vector.broadcast %14 : f32 to vector<16x1xf32>
    %30 = arith.divf %28, %29 : vector<16x1xf32>
    %31 = vector.broadcast %15 : f32 to vector<16x1xf32>
    %32 = arith.minimumf %30, %31 : vector<16x1xf32>
    %33 = arith.mulf %32, %32 : vector<16x1xf32>
    %cst_9 = arith.constant 1.000000e+00 : f32
    %34 = vector.broadcast %cst_9 : f32 to vector<16x1xf32>
    %35 = arith.mulf %34, %33 : vector<16x1xf32>
    %cst_10 = arith.constant 1.000000e+00 : f32
    %36 = vector.broadcast %cst_10 : f32 to vector<16x1xf32>
    %37 = arith.subf %36, %35 : vector<16x1xf32>
    %cst_11 = arith.constant 1.000000e+00 : f32
    %38 = vector.broadcast %cst_11 : f32 to vector<16x1xf32>
    %39 = arith.divf %38, %37 : vector<16x1xf32>
    %cst_12 = arith.constant 1.000000e+00 : f32
    %40 = vector.broadcast %cst_12 : f32 to vector<16x1xf32>
    %41 = arith.mulf %40, %33 : vector<16x1xf32>
    %cst_13 = arith.constant 1.000000e+00 : f32
    %42 = vector.broadcast %cst_13 : f32 to vector<16x1xf32>
    %43 = arith.addf %42, %41 : vector<16x1xf32>
    %44 = arith.mulf %43, %39 : vector<16x1xf32>
    %cst_14 = arith.constant 0.000000e+00 : f32
    %45 = vector.broadcast %cst_14 : f32 to vector<16x1xf32>
    %46 = arith.select %8, %44, %45 : vector<16x1xi1>, vector<16x1xf32>
    %47 = arith.divf %32, %21 : vector<16x1xf32>
    %cst_15 = arith.constant 2.000000e+00 : f32
    %48 = vector.broadcast %cst_15 : f32 to vector<16x1xf32>
    %49 = arith.mulf %48, %47 : vector<16x1xf32>
    %50 = arith.mulf %49, %39 : vector<16x1xf32>
    %51 = vector.broadcast %50 : vector<16x1xf32> to vector<16x128xf32>
    %52 = arith.mulf %13, %51 : vector<16x128xf32>
    %c0_16 = arith.constant 0 : index
    %c0_17 = arith.constant 0 : index
    %53 = vector.load %arg3[%c0_16, %c0_17] : memref<1x128xf32, #tpu.memory_space<vmem>>, vector<1x128xf32>
    %cst_18 = arith.constant dense<0.000000e+00> : vector<128xf32>
    %54 = vector.multi_reduction <add>, %52, %cst_18 [0] : vector<16x128xf32> to vector<128xf32>
    %55 = vector.shape_cast %54 : vector<128xf32> to vector<1x128xf32>
    %56 = arith.addf %53, %55 : vector<1x128xf32>
    %c0_19 = arith.constant 0 : index
    %c0_20 = arith.constant 0 : index
    %57 = vector.load %arg3[%c0_19, %c0_20] : memref<1x128xf32, #tpu.memory_space<vmem>>, vector<1x128xf32>
    tpu.vector_store %arg3[%c0_19, %c0_20], %56 {strides = array<i32>} : memref<1x128xf32, #tpu.memory_space<vmem>>, vector<1x128xf32>,
    %c0_21 = arith.constant 0 : index
    %c0_22 = arith.constant 0 : index
    %58 = vector.load %arg4[%c0_21, %c0_22] : memref<1x1xf32, #tpu.memory_space<vmem>>, vector<1x1xf32>
    %cst_23 = arith.constant dense<0.000000e+00> : vector<1xf32>
    %59 = vector.multi_reduction <add>, %46, %cst_23 [0] : vector<16x1xf32> to vector<1xf32>
    %60 = vector.shape_cast %59 : vector<1xf32> to vector<1x1xf32>
    %61 = arith.addf %58, %60 : vector<1x1xf32>
    %c0_24 = arith.constant 0 : index
    %c0_25 = arith.constant 0 : index
    %62 = vector.load %arg4[%c0_24, %c0_25] : memref<1x1xf32, #tpu.memory_space<vmem>>, vector<1x1xf32>
    tpu.vector_store %arg4[%c0_24, %c0_25], %61 {strides = array<i32>} : memref<1x1xf32, #tpu.memory_space<vmem>>, vector<1x1xf32>,
    %c3_i32 = arith.constant 3 : i32
    %63 = arith.cmpi eq, %arg0, %c3_i32 : i32
    %64 = arith.extui %63 : i1 to i32
    %c0_i32_26 = arith.constant 0 : i32
    %65 = arith.cmpi ne, %64, %c0_i32_26 : i32
    scf.if %65 {
      %c0_27 = arith.constant 0 : index
      %c0_28 = arith.constant 0 : index
      %66 = vector.load %arg3[%c0_27, %c0_28] : memref<1x128xf32, #tpu.memory_space<vmem>>, vector<1x128xf32>
      %c0_29 = arith.constant 0 : index
      %c0_30 = arith.constant 0 : index
      %67 = vector.load %arg4[%c0_29, %c0_30] : memref<1x1xf32, #tpu.memory_space<vmem>>, vector<1x1xf32>
      %68 = vector.broadcast %67 : vector<1x1xf32> to vector<1x128xf32>
      %69 = arith.divf %66, %68 : vector<1x128xf32>
      %70 = arith.mulf %69, %69 : vector<1x128xf32>
      %cst_31 = arith.constant dense<0.000000e+00> : vector<1xf32>
      %71 = vector.multi_reduction <add>, %70, %cst_31 [1] : vector<1x128xf32> to vector<1xf32>
      %72 = vector.shape_cast %71 : vector<1xf32> to vector<1x1xf32>
      %cst_32 = arith.constant 1.000000e+00 : f32
      %73 = vector.broadcast %cst_32 : f32 to vector<1x1xf32>
      %74 = arith.mulf %73, %72 : vector<1x1xf32>
      %cst_33 = arith.constant 1.000000e+00 : f32
      %75 = vector.broadcast %cst_33 : f32 to vector<1x1xf32>
      %76 = arith.subf %75, %74 : vector<1x1xf32>
      %77 = math.sqrt %76 : vector<1x1xf32>
      %cst_34 = arith.constant 1.000000e+00 : f32
      %78 = vector.broadcast %cst_34 : f32 to vector<1x1xf32>
      %79 = arith.addf %78, %77 : vector<1x1xf32>
      %80 = vector.broadcast %79 : vector<1x1xf32> to vector<1x128xf32>
      %81 = arith.divf %69, %80 : vector<1x128xf32>
      %c0_35 = arith.constant 0 : index
      %c0_36 = arith.constant 0 : index
      %82 = vector.load %arg2[%c0_35, %c0_36] : memref<1x128xf32, #tpu.memory_space<vmem>>, vector<1x128xf32>
      tpu.vector_store %arg2[%c0_35, %c0_36], %81 {strides = array<i32>} : memref<1x128xf32, #tpu.memory_space<vmem>>, vector<1x128xf32>,
    } else {
    }
    return
  }
  func.func @transform_0(%arg0: i32) -> (i32, i32) {
    %c0_i32 = arith.constant 0 : i32
    %c0_i32_0 = arith.constant 0 : i32
    return %arg0, %c0_i32 : i32, i32
  }
  func.func @transform_1(%arg0: i32) -> (i32, i32) {
    %c0_i32 = arith.constant 0 : i32
    %c0_i32_0 = arith.constant 0 : i32
    %c0_i32_1 = arith.constant 0 : i32
    return %c0_i32, %c0_i32_0 : i32, i32
  }
}

</mosaic_0001>

<llo_original>
// kernel: tpu_custom_call.1
$region0: #{tpu_custom_call.1}
  #allocation0 [shape = 'u32[]', space=smem, size = 0x4, offset = 0x4, fixed_abs, tag = 'smem constant byte address 0x4 - core index']
  #allocation1 [shape = 'u32[144,128]{1,0:T(1,128)}', space=vmem, size = 0x12000, scoped, tag = 'internal scratch']
  #allocation2 [shape = 'f32[1,128]{1,0:T(1,128)}', space=vmem, size = 0x200, scoped, tag = 'scratch operand']
  #allocation3 [shape = 'f32[1,1]{1,0:T(1,128)}', space=vmem, size = 0x200, scoped, tag = 'scratch operand']
  %s0 = inlined_call_operand.hbm [shape: f32[60,128], index: 0, kind: input, shape index: {}]
  %s1 = inlined_call_operand.hbm [shape: f32[1,128], index: 1, kind: output, shape index: {}]
  %s2 = sld [smem:[#allocation0]]
  $region49: #{tpu_custom_call.1} parent=0
    _
  %s4 = ssub.s32 1, %s2
  %s5 = scalar_select 0, %s4, %s2
  $region1: #{tpu_custom_call.1} parent=0
    #allocation4 [shape = 'u8[16384]{0}', space=vmem, size = 0x4000, scoped, tag = 'input window, operand 0']
    #allocation5 [shape = 's32[2]{0}', space=sflag, size = 0x8, scoped, tag = 'scoped memory for tpu_custom_call.1']
    #allocation6 [shape = 's32[2]{0}', space=sflag, size = 0x8, scoped, tag = 'scoped memory for tpu_custom_call.1']
    #allocation7 [shape = 'u8[512]{0}', space=vmem, size = 0x400, scoped, tag = 'output window, operand 0, single buffered']
    %6 = vsyncpa [#allocation5], 0
    %s7 = scalar_lea.sflag [#allocation5], 1
    %8 = vsyncpa %s7, 0
    %9 = vsyncpa [#allocation6], 0
    loop: start=0, step=1, limit=6
    $region2: #{tpu_custom_call.1} parent=1 // loop_pre_header
      _
    $region3: #{tpu_custom_call.1} parent=1 // loop_header
      %s11 = sphi 0, %s15
      %p12 = scmp.ge.s32.totalorder %s11, 6
      %s21 = sphi 0, %s23
      %s24 = sphi 0, %s21
      %s25 = sphi 0, %s24
      %s41 = sphi 0, %s25
      %s45 = sphi 0, %s45
      %s47 = sphi 0, %s45
      %s48 = sphi 0, %s47
      %s62 = sphi 0, %s48
    $region4: #{tpu_custom_call.1} parent=1 // loop_header_branch
      %14 = sbr.rel (%p12) target = $region8
    $region5: #{tpu_custom_call.1} parent=1 // loop_body
      %s16 = ssub.s32 %s11, 1
      %s17 = ssub.s32 %s11, 2
      %s18 = sadd.s32 %s11, 1
      %s19 = ssub.s32 %s11, %s18
      %p20 = scmp.eq.s32.totalorder %s19, 0
      %s22 = sadd.s32 %s21, 1
      %s23 = scalar_select %p20, %s21, %s22
      %p26 = pneg %p20
      %p27 = scmp.eq.s32.totalorder %s11, 3
      %p28 = por %p26, %p27
      %p29 = scmp.ne.s32.totalorder %s21, %s24
      %p30 = scmp.eq.s32.totalorder %s11, 0
      %p31 = por %p29, %p30
      %p32 = scmp.ne.s32.totalorder %s21, %s24
      %p33 = scmp.eq.s32.totalorder %s16, 3
      %p34 = por %p32, %p33
      %p35 = scmp.ne.s32.totalorder %s24, %s25
      %p36 = scmp.eq.s32.totalorder %s16, 0
      %p37 = por %p35, %p36
      %p38 = scmp.ne.s32.totalorder %s24, %s25
      %p39 = scmp.eq.s32.totalorder %s17, 3
      %p40 = por %p38, %p39
      %p42 = scmp.ne.s32.totalorder %s25, %s41
      %p43 = scmp.eq.s32.totalorder %s17, 0
      %p44 = por %p42, %p43
      %s46 = sadd.s32 %s45, 1
      %p49 = scmp.eq.s32.totalorder %s11, 3
      %p50 = scmp.ne.s32.totalorder %s45, %s47
      %p51 = scmp.eq.s32.totalorder %s11, 0
      %p52 = por %p50, %p51
      %p53 = scmp.ne.s32.totalorder %s45, %s47
      %p54 = scmp.eq.s32.totalorder %s16, 3
      %p55 = por %p53, %p54
      %p56 = scmp.ne.s32.totalorder %s47, %s48
      %p57 = scmp.eq.s32.totalorder %s16, 0
      %p58 = por %p56, %p57
      %p59 = scmp.ne.s32.totalorder %s47, %s48
      %p60 = scmp.eq.s32.totalorder %s17, 3
      %p61 = por %p59, %p60
      %p63 = scmp.ne.s32.totalorder %s48, %s62
      %p64 = scmp.eq.s32.totalorder %s17, 0
      %p65 = por %p63, %p64
      %p66 = scmp.le.s32.totalorder 1, %s11
      %p67 = scmp.lt.s32.totalorder %s11, 5
      %p68 = pnand %p66, %p67
      %p69 = pneg %p68
      // Predicated region
      $region9: #{tpu_custom_call.1} parent=5 // pred_check
        _
      $region10: #{tpu_custom_call.1} parent=5 // pred_check_branch
        %71 = sbr.rel (%p68) target = $region12
      $region11: #{tpu_custom_call.1} parent=5 // pred_region
        %s72 = ssub.s32 %s11, 1
      $region12: #{tpu_custom_call.1} parent=5 // pred_fallthru
        _
      %p73 = scmp.lt.s32.totalorder %s11, 4
      // Predicated region
      $region13: #{tpu_custom_call.1} parent=5 // pred_check
        %p74 = pneg %p73
      $region14: #{tpu_custom_call.1} parent=5 // pred_check_branch
        %76 = sbr.rel (%p74) target = $region16
      $region15: #{tpu_custom_call.1} parent=5 // pred_region
        // Predicated region
        $region17: #{tpu_custom_call.1} parent=15 // pred_check
          %p77 = pneg %p31
        $region18: #{tpu_custom_call.1} parent=15 // pred_check_branch
          %79 = sbr.rel (%p77) target = $region20
        $region19: #{tpu_custom_call.1} parent=15 // pred_region
          %s80 = sand.u32 %s21, 1
          %s81 = scalar_lea.sflag [#allocation5], %s80
          %s82 = sand.u32 %s21, 1
          %s83 = smul.addr %s82, 16
          %s84 = scalar_lea.vmem [#allocation4], %s83
          %s85 = smul.u32 2, %s11
          %s87 = ssub.s32 256, 256
          %88 = vsyncadd %s81, %s87
          %s89 = smul.addr %s85, 128
          %s90 = scalar_lea.hbm %s0, %s89
          %s91 = sshll.u32 %s84, 4
          %s92 = int_to_ptr.vmem [resolvable:$true] %s91
          %97 = dma.hbm_to_vmem [thread:$0]  %s90, 256, %s92, %s81, 128, 128, 8
        $region20: #{tpu_custom_call.1} parent=15 // pred_fallthru
          _
      $region16: #{tpu_custom_call.1} parent=5 // pred_fallthru
        _
      %p98 = scmp.le.s32.totalorder 1, %s11
      %p99 = scmp.lt.s32.totalorder %s11, 5
      %p100 = pnand %p98, %p99
      %p101 = pneg %p100
      // Predicated region
      $region21: #{tpu_custom_call.1} parent=5 // pred_check
        _
      $region22: #{tpu_custom_call.1} parent=5 // pred_check_branch
        %103 = sbr.rel (%p100) target = $region24
      $region23: #{tpu_custom_call.1} parent=5 // pred_region
        %s104 = ssub.s32 %s11, 1
        %s105 = sand.u32 %s24, 1
        %s106 = scalar_lea.sflag [#allocation5], %s105
        %s107 = sand.u32 %s24, 1
        %s108 = smul.addr %s107, 16
        %s109 = scalar_lea.vmem [#allocation4], %s108
        // Predicated region
        $region25: #{tpu_custom_call.1} parent=23 // pred_check
          %p110 = pneg %p37
        $region26: #{tpu_custom_call.1} parent=23 // pred_check_branch
          %112 = sbr.rel (%p110) target = $region28
        $region27: #{tpu_custom_call.1} parent=23 // pred_region
          %113 = dma.done %s106, 256
        $region28: #{tpu_custom_call.1} parent=23 // pred_fallthru
          _
        %s114 = sand.u32 %s24, 1
        %s115 = scalar_lea.sflag [#allocation5], %s114
        %s116 = sand.u32 %s24, 1
        %s117 = smul.addr %s116, 16
        %s118 = scalar_lea.vmem [#allocation4], %s117
        %p119 = pneg %p37
        %p120 = pneg %p34
        %p121 = pneg %p58
        %p122 = pneg %p55
        %s123 = smul.u32 2, %s16
        %p124 = scmp.eq.s32.totalorder %s16, 0
        // Predicated region
        $region29: #{tpu_custom_call.1} parent=23 // pred_check
          %p125 = pneg %p124
        $region30: #{tpu_custom_call.1} parent=23 // pred_check_branch
          %127 = sbr.rel (%p125) target = $region32
        $region31: #{tpu_custom_call.1} parent=23 // pred_region
          %128 = vst [vmem:[#allocation2] sm:$0x1] 0.0
          %vm129 = vcmask 0
          %130 = vst.msk [vmem:[#allocation3] sm:$0x1] %vm129, 0.0
        $region32: #{tpu_custom_call.1} parent=23 // pred_fallthru
          _
        %s131 = smul.u32 %s16, 16
        %v132 = vlaneseq
        %v133 = vshrl.u32 %v132, 7
        %v134 = vadd.s32 %v133, 8
        %v135 = vstv %s131
        %v136 = vadd.s32 %v135, %v133
        %v137 = vadd.s32 %v135, %v134
        %vm138 = vcmp.lt.s32.totalorder %v136, 60
        %vm139 = vcmp.lt.s32.totalorder %v137, 60
        %v140 = vld [vmem:[%s109] sm:$0xff]
        %v141 = vld [vmem:[%s109 + $0x8] sm:$0xff]
        %v142 = vsel %vm138, 1, 0
        %v143 = vsel %vm139, 1, 0
        %vm144 = vcmp.eq.s32.totalorder %v142, 1
        %vm145 = vcmp.eq.s32.totalorder %v143, 1
        %v146 = vsel %vm144, %v140, 0.0
        %v147 = vsel %vm145, %v141, 0.0
        %v148 = vmul.f32 %v146, %v146
        %v149 = vmul.f32 %v147, %v147
        %150 = vadd.xlane.f32.xlu0 %v148
        %v151 = vpop.xlane.xlu0 %150
        %152 = vadd.xlane.f32.xlu0 %v149
        %v153 = vpop.xlane.xlu0 %152
        %v154 = vrsqrt.pop %v151
        %v155 = vmul.f32 %v151, %v154
        %vm156 = vcmp.eq.f32.partialorder %v151, inf
        %v157 = vsel %vm156, %v151, %v155
        %vm158 = vcmp.eq.f32.partialorder %v151, 0.0
        %v159 = vand.u32 %v151, 2147483648
        %v160 = vsel %vm158, %v159, %v157
        %v161 = vrsqrt.pop %v153
        %v162 = vmul.f32 %v153, %v161
        %vm163 = vcmp.eq.f32.partialorder %v153, inf
        %v164 = vsel %vm163, %v153, %v162
        %vm165 = vcmp.eq.f32.partialorder %v153, 0.0
        %v166 = vand.u32 %v153, 2147483648
        %v167 = vsel %vm165, %v166, %v164
        %v168 = vmax.f32 %v160, 1e-05
        %v169 = vmax.f32 %v167, 1e-05
        %v170 = vmax.f32 %v168, -15.0
        %v171 = vmax.f32 %v169, -15.0
        %v172 = vmin.f32 %v170, 15.0
        %v173 = vmin.f32 %v171, 15.0
        %v174 = vtanh.pop %v172
        %v175 = vtanh.pop %v173
        %v176 = vmin.f32 %v174, 0.999
        %v177 = vmin.f32 %v175, 0.999
        %v178 = vmul.f32 %v176, %v176
        %v179 = vmul.f32 %v177, %v177
        %v180 = vsub.f32 1.0, %v178
        %v181 = vsub.f32 1.0, %v179
        %v182 = vrcp.pop %v180
        %v183 = vmul.f32 1.0, %v182
        %v184 = vrcp.pop %v181
        %v185 = vmul.f32 1.0, %v184
        %v186 = vadd.f32 %v178, 1.0
        %v187 = vadd.f32 %v179, 1.0
        %v188 = vmul.f32 %v186, %v183
        %v189 = vmul.f32 %v187, %v185
        %v190 = vsel %vm138, %v188, 0.0
        %v191 = vsel %vm139, %v189, 0.0
        %v192 = vrcp.pop %v168
        %v193 = vmul.f32 %v176, %v192
        %v194 = vrcp.pop %v169
        %v195 = vmul.f32 %v177, %v194
        %v196 = vmul.f32 %v193, 2.0
        %v197 = vmul.f32 %v195, 2.0
        %v198 = vmul.f32 %v196, %v183
        %v199 = vmul.f32 %v197, %v185
        %v200 = vmul.f32 %v146, %v198
        %v201 = vmul.f32 %v147, %v199
        %v202 = vld [vmem:[#allocation2] sm:$0x1]
        %v203 = vadd.f32 %v200, %v201
        %v204 = vrot.slane %v203, 4
        %v205 = vadd.f32 %v203, %v204
        %v206 = vrot.slane %v205, 2
        %v207 = vadd.f32 %v205, %v206
        %v208 = vrot.slane %v207, 1
        %v209 = vadd.f32 %v207, %v208
        %v210 = vadd.f32 %v202, %v209
        %211 = vst [vmem:[#allocation2] sm:$0x1] %v210
        %v212 = vld [vmem:[#allocation3] sm:$0x1]
        %v213 = vadd.f32 %v190, %v191
        %v214 = vrot.slane %v213, 4
        %v215 = vadd.f32 %v213, %v214
        %v216 = vrot.slane %v215, 2
        %v217 = vadd.f32 %v215, %v216
        %v218 = vrot.slane %v217, 1
        %v219 = vadd.f32 %v217, %v218
        %v220 = vadd.f32 %v212, %v219
        %vm221 = vcmask 0
        %222 = vst.msk [vmem:[#allocation3] sm:$0x1] %vm221, %v220
        %p223 = scmp.eq.s32.totalorder %s16, 3
        // Predicated region
        $region33: #{tpu_custom_call.1} parent=23 // pred_check
          %p224 = pneg %p223
        $region34: #{tpu_custom_call.1} parent=23 // pred_check_branch
          %226 = sbr.rel (%p224) target = $region36
        $region35: #{tpu_custom_call.1} parent=23 // pred_region
          %v227 = vld [vmem:[#allocation2] sm:$0x1]
          %v228 = vld [vmem:[#allocation3] sm:$0x1]
          %230 = vset.pattern.permute.xlu0 0
          %231 = vperm.xlu0 %230, %v228
          %v232 = vpop.permute.xlu0 %231
          %v234 = vlaneseq
          %v235 = vshrl.u32 %v234, 7
          %v236 = vsub.s32 0, %v235
          %v237 = vrot.slane %v232, %v236
          %v238 = vrcp.pop %v237
          %v239 = vmul.f32 %v227, %v238
          %v240 = vmul.f32 %v239, %v239
          %vm241 = vcmask 1040384
          %v242 = vsel %vm241, %v240, 0.0
          %243 = vadd.xlane.f32.xlu0 %v242
          %v244 = vpop.xlane.xlu0 %243
          %v245 = vsub.f32 1.0, %v244
          %v246 = vrsqrt.pop %v245
          %v247 = vmul.f32 %v245, %v246
          %vm248 = vcmp.eq.f32.partialorder %v245, inf
          %v249 = vsel %vm248, %v245, %v247
          %vm250 = vcmp.eq.f32.partialorder %v245, 0.0
          %v251 = vand.u32 %v245, 2147483648
          %v252 = vsel %vm250, %v251, %v249
          %v253 = vadd.f32 %v252, 1.0
          %v254 = vrcp.pop %v253
          %v255 = vmul.f32 %v239, %v254
          %256 = vst [vmem:[#allocation7] sm:$0x1] %v255
        $region36: #{tpu_custom_call.1} parent=23 // pred_fallthru
          _
        // Predicated region
        $region37: #{tpu_custom_call.1} parent=23 // pred_check
          %p257 = pneg %p55
        $region38: #{tpu_custom_call.1} parent=23 // pred_check_branch
          %259 = sbr.rel (%p257) target = $region40
        $region39: #{tpu_custom_call.1} parent=23 // pred_region
          %s261 = ssub.s32 16, 16
          %262 = vsyncadd [#allocation6], %s261
          %s264 = sshll.u32 [#allocation7], 4
          %s265 = int_to_ptr.vmem [resolvable:$true] %s264
          %267 = dma.vmem_to_hbm [thread:$0]  %s265, 16, %s1, [#allocation6]
        $region40: #{tpu_custom_call.1} parent=23 // pred_fallthru
          _
        // Predicated region
        $region41: #{tpu_custom_call.1} parent=23 // pred_check
          %p268 = pneg %p55
        $region42: #{tpu_custom_call.1} parent=23 // pred_check_branch
          %270 = sbr.rel (%p268) target = $region44
        $region43: #{tpu_custom_call.1} parent=23 // pred_region
          %271 = dma.done [#allocation6], 16
        $region44: #{tpu_custom_call.1} parent=23 // pred_fallthru
          _
      $region24: #{tpu_custom_call.1} parent=5 // pred_fallthru
        _
      %p272 = scmp.le.s32.totalorder 2, %s11
      // Predicated region
      $region45: #{tpu_custom_call.1} parent=5 // pred_check
        %p273 = pneg %p272
      $region46: #{tpu_custom_call.1} parent=5 // pred_check_branch
        %275 = sbr.rel (%p273) target = $region48
      $region47: #{tpu_custom_call.1} parent=5 // pred_region
        %s276 = ssub.s32 %s11, 2
      $region48: #{tpu_custom_call.1} parent=5 // pred_fallthru
        _
    $region6: #{tpu_custom_call.1} parent=1 // loop_footer
      %s15 = sadd.s32 1, %s11
    $region7: #{tpu_custom_call.1} parent=1 // loop_footer_branch
      %10 = sbr.rel target = $region3
    $region8: #{tpu_custom_call.1} parent=1 // loop_exit
      _
    %277 = vsyncpa [#allocation5], 1
    %s278 = scalar_lea.sflag [#allocation5], 1
    %279 = vsyncpa %s278, 1
    %280 = vsyncpa [#allocation6], 1
    %s281 = scalar_lea.sflag [#allocation6], 1
    %282 = vsyncpa %s281, 1

</llo_original>
